<compile_context>
chip_gen: v6e
topology: v6e:2x2x1
jax: 0.10.0
libtpu: 0.0.40
codegen_flags: <defaults>
</compile_context>

<pallas_src>
import jax
import jax.numpy as jnp
from jax.experimental import pallas as pl
from jax.experimental.pallas import tpu as pltpu

STATE_DIM = 32
ACTION_DIM = 4
HIDDEN = 256          # module default hidden_dim=(256, 256)
BATCH = 16


def mlp_kernel(x_ref, w1_ref, w23_ref, w4_ref, b_ref, o_ref):
    # Layer 1: Linear(S -> 256) + ReLU        (bf16 x bf16 MXU, f32 acc)
    x = x_ref[...].astype(jnp.bfloat16)
    z = jnp.dot(x, w1_ref[...],
                preferred_element_type=jnp.float32) + b_ref[0:1, :]
    z = jnp.maximum(z, 0.0)
    # Layer 2: Linear(256 -> 256) + ReLU      (bf16 x bf16 MXU, f32 acc)
    z = jnp.dot(z.astype(jnp.bfloat16), w23_ref[0],
                preferred_element_type=jnp.float32) + b_ref[1:2, :]
    z = jnp.maximum(z, 0.0)
    # Layer 3: Linear(256 -> 256) + ReLU      (bf16 x bf16 MXU, f32 acc)
    z = jnp.dot(z.astype(jnp.bfloat16), w23_ref[1],
                preferred_element_type=jnp.float32) + b_ref[2:3, :]
    z = jnp.maximum(z, 0.0)
    # Last layer: Linear(256 -> A), no activation; real (B, A) output.
    o_ref[...] = (jnp.dot(z.astype(jnp.bfloat16), w4_ref[...],
                          preferred_element_type=jnp.float32)
                  + b_ref[3:4, 0:ACTION_DIM])


def prepare_params(params):
    """One-time parameter packing (NOT in the per-call path):
       bf16 weights for the MXU, w2/w3 stacked, all biases in one f32 slab."""
    (w1, b1), (w2, b2), (w3, b3), (w4, b4) = params
    w1b = w1.astype(jnp.bfloat16)                              # (S, 256)
    w23 = jnp.stack([w2, w3], axis=0).astype(jnp.bfloat16)     # (2, 256, 256)
    w4b = w4.astype(jnp.bfloat16)                              # (256, A)
    b4p = jnp.pad(b4, ((0, 0), (0, HIDDEN - ACTION_DIM)))      # (1, 256)
    bias = jnp.concatenate([b1, b2, b3, b4p], axis=0)          # (4, 256) f32
    return w1b, w23, w4b, bias.astype(jnp.float32)


def mlp_forward(x, prepped):
    w1, w23, w4, bias = prepped
    B = x.shape[0]
    vmem = pl.BlockSpec(memory_space=pltpu.MemorySpace.VMEM)
    return pl.pallas_call(
        mlp_kernel,
        out_shape=jax.ShapeDtypeStruct((B, ACTION_DIM), jnp.float32),
        in_specs=[vmem] * 5,     # full arrays, VMEM-resident, no grid/pipeline
        out_specs=vmem,
    )(x, w1, w23, w4, bias)


def init_linear(key, fan_in, fan_out):
    # PyTorch nn.Linear default init: U(-1/sqrt(fan_in), 1/sqrt(fan_in))
    kw, kb = jax.random.split(key)
    bound = 1.0 / jnp.sqrt(jnp.float32(fan_in))
    w = jax.random.uniform(kw, (fan_in, fan_out), jnp.float32, -bound, bound)
    b = jax.random.uniform(kb, (1, fan_out), jnp.float32, -bound, bound)
    return w, b


def reference_forward_mirror(x, params):
    # Mirrors the kernel's dtype handling exactly (bf16 matmul operands
    # everywhere, f32 accumulation, f32 bias/ReLU).
    (w1, b1), (w2, b2), (w3, b3), (w4, b4) = params
    bf = jnp.bfloat16
    z = jnp.maximum(jnp.dot(x.astype(bf), w1.astype(bf),
                            preferred_element_type=jnp.float32) + b1, 0.0)
    z = jnp.maximum(jnp.dot(z.astype(bf), w2.astype(bf),
                            preferred_element_type=jnp.float32) + b2, 0.0)
    z = jnp.maximum(jnp.dot(z.astype(bf), w3.astype(bf),
                            preferred_element_type=jnp.float32) + b3, 0.0)
    return jnp.dot(z.astype(bf), w4.astype(bf),
                   preferred_element_type=jnp.float32) + b4


def reference_forward_f32(x, params):
    # Pure-f32 reference (matches the original PyTorch net numerics) to check
    # that the bf16 weight quantization has acceptable drift.
    (w1, b1), (w2, b2), (w3, b3), (w4, b4) = params
    z = jnp.maximum(x @ w1 + b1, 0.0)
    z = jnp.maximum(z @ w2 + b2, 0.0)
    z = jnp.maximum(z @ w3 + b3, 0.0)
    return z @ w4 + b4


if __name__ == "__main__":
    key = jax.random.PRNGKey(0)
    k_x, k1, k2, k3, k4 = jax.random.split(key, 5)

    params = [
        init_linear(k1, STATE_DIM, HIDDEN),
        init_linear(k2, HIDDEN, HIDDEN),
        init_linear(k3, HIDDEN, HIDDEN),
        init_linear(k4, HIDDEN, ACTION_DIM),
    ]
    x = jax.random.normal(k_x, (BATCH, STATE_DIM), jnp.float32)

    # One-time parameter preparation (outside the per-call path).
    prepped = jax.block_until_ready(prepare_params(params))

    out = jax.block_until_ready(mlp_forward(x, prepped))
    assert out.shape == (BATCH, ACTION_DIM)

    # Tight check against a reference that mirrors the kernel's dtypes.
    ref_m = reference_forward_mirror(x, params)
    assert jnp.allclose(out, ref_m, atol=2e-3, rtol=2e-3), \
        float(jnp.max(jnp.abs(out - ref_m)))

    # Looser check against the pure-f32 (original PyTorch) numerics to bound
    # the bf16-weight quantization drift.
    ref_f = reference_forward_f32(x, params)
    assert jnp.allclose(out, ref_f, atol=1e-1, rtol=1e-1), \
        float(jnp.max(jnp.abs(out - ref_f)))

    print("KERNEL_OK")
</pallas_src>

<mosaic_0001>
module attributes {stable_mosaic.version = 11 : i64} {
  func.func @mlp_kernel(%arg0: memref<16x32xf32, #tpu.memory_space<vmem>>, %arg1: memref<32x256xbf16, #tpu.memory_space<vmem>>, %arg2: memref<2x256x256xbf16, #tpu.memory_space<vmem>>, %arg3: memref<256x4xbf16, #tpu.memory_space<vmem>>, %arg4: memref<4x256xf32, #tpu.memory_space<vmem>>, %arg5: memref<16x4xf32, #tpu.memory_space<vmem>>) attributes {dimension_semantics = [], scalar_prefetch = 0 : i64, scratch_operands = 0 : i64, tpu.core_type = #tpu.core_type<tc>} {
    %c0 = arith.constant 0 : index
    %c0_0 = arith.constant 0 : index
    %0 = vector.load %arg0[%c0, %c0_0] : memref<16x32xf32, #tpu.memory_space<vmem>>, vector<16x32xf32>
    %1 = arith.truncf %0 : vector<16x32xf32> to vector<16x32xbf16>
    %c0_1 = arith.constant 0 : index
    %c0_2 = arith.constant 0 : index
    %2 = vector.load %arg1[%c0_1, %c0_2] : memref<32x256xbf16, #tpu.memory_space<vmem>>, vector<32x256xbf16>
    %cst = arith.constant dense<0.000000e+00> : vector<16x256xf32>
    %3 = tpu.matmul %1, %2, %cst {dimension_numbers = #tpu.dot_dimension_numbers<[1], [0], [0], [1], [0, 0, 1, 1], [], []>} : vector<16x32xbf16>, vector<32x256xbf16>, vector<16x256xf32> -> vector<16x256xf32>
    %c0_3 = arith.constant 0 : index
    %c0_4 = arith.constant 0 : index
    %4 = vector.load %arg4[%c0_3, %c0_4] : memref<4x256xf32, #tpu.memory_space<vmem>>, vector<1x256xf32>
    %5 = vector.broadcast %4 : vector<1x256xf32> to vector<16x256xf32>
    %6 = arith.addf %3, %5 : vector<16x256xf32>
    %cst_5 = arith.constant 0.000000e+00 : f32
    %7 = vector.broadcast %cst_5 : f32 to vector<16x256xf32>
    %8 = arith.maximumf %6, %7 : vector<16x256xf32>
    %9 = arith.truncf %8 : vector<16x256xf32> to vector<16x256xbf16>
    %c0_6 = arith.constant 0 : index
    %c0_7 = arith.constant 0 : index
    %c0_8 = arith.constant 0 : index
    %10 = vector.load %arg2[%c0_6, %c0_7, %c0_8] : memref<2x256x256xbf16, #tpu.memory_space<vmem>>, vector<1x256x256xbf16>
    %11 = vector.shape_cast %10 : vector<1x256x256xbf16> to vector<256x256xbf16>
    %cst_9 = arith.constant dense<0.000000e+00> : vector<16x256xf32>
    %12 = tpu.matmul %9, %11, %cst_9 {dimension_numbers = #tpu.dot_dimension_numbers<[1], [0], [0], [1], [0, 0, 1, 1], [], []>} : vector<16x256xbf16>, vector<256x256xbf16>, vector<16x256xf32> -> vector<16x256xf32>
    %c1 = arith.constant 1 : index
    %c0_10 = arith.constant 0 : index
    %13 = vector.load %arg4[%c1, %c0_10] : memref<4x256xf32, #tpu.memory_space<vmem>>, vector<1x256xf32>
    %14 = vector.broadcast %13 : vector<1x256xf32> to vector<16x256xf32>
    %15 = arith.addf %12, %14 : vector<16x256xf32>
    %cst_11 = arith.constant 0.000000e+00 : f32
    %16 = vector.broadcast %cst_11 : f32 to vector<16x256xf32>
    %17 = arith.maximumf %15, %16 : vector<16x256xf32>
    %18 = arith.truncf %17 : vector<16x256xf32> to vector<16x256xbf16>
    %c1_12 = arith.constant 1 : index
    %c0_13 = arith.constant 0 : index
    %c0_14 = arith.constant 0 : index
    %19 = vector.load %arg2[%c1_12, %c0_13, %c0_14] : memref<2x256x256xbf16, #tpu.memory_space<vmem>>, vector<1x256x256xbf16>
    %20 = vector.shape_cast %19 : vector<1x256x256xbf16> to vector<256x256xbf16>
    %cst_15 = arith.constant dense<0.000000e+00> : vector<16x256xf32>
    %21 = tpu.matmul %18, %20, %cst_15 {dimension_numbers = #tpu.dot_dimension_numbers<[1], [0], [0], [1], [0, 0, 1, 1], [], []>} : vector<16x256xbf16>, vector<256x256xbf16>, vector<16x256xf32> -> vector<16x256xf32>
    %c2 = arith.constant 2 : index
    %c0_16 = arith.constant 0 : index
    %22 = vector.load %arg4[%c2, %c0_16] : memref<4x256xf32, #tpu.memory_space<vmem>>, vector<1x256xf32>
    %23 = vector.broadcast %22 : vector<1x256xf32> to vector<16x256xf32>
    %24 = arith.addf %21, %23 : vector<16x256xf32>
    %cst_17 = arith.constant 0.000000e+00 : f32
    %25 = vector.broadcast %cst_17 : f32 to vector<16x256xf32>
    %26 = arith.maximumf %24, %25 : vector<16x256xf32>
    %27 = arith.truncf %26 : vector<16x256xf32> to vector<16x256xbf16>
    %c0_18 = arith.constant 0 : index
    %c0_19 = arith.constant 0 : index
    %28 = vector.load %arg3[%c0_18, %c0_19] : memref<256x4xbf16, #tpu.memory_space<vmem>>, vector<256x4xbf16>
    %cst_20 = arith.constant dense<0.000000e+00> : vector<16x4xf32>
    %29 = tpu.matmul %27, %28, %cst_20 {dimension_numbers = #tpu.dot_dimension_numbers<[1], [0], [0], [1], [0, 0, 1, 1], [], []>} : vector<16x256xbf16>, vector<256x4xbf16>, vector<16x4xf32> -> vector<16x4xf32>
    %c3 = arith.constant 3 : index
    %c0_21 = arith.constant 0 : index
    %30 = vector.load %arg4[%c3, %c0_21] : memref<4x256xf32, #tpu.memory_space<vmem>>, vector<1x4xf32>
    %31 = vector.broadcast %30 : vector<1x4xf32> to vector<16x4xf32>
    %32 = arith.addf %29, %31 : vector<16x4xf32>
    %c0_22 = arith.constant 0 : index
    %c0_23 = arith.constant 0 : index
    %33 = vector.load %arg5[%c0_22, %c0_23] : memref<16x4xf32, #tpu.memory_space<vmem>>, vector<16x4xf32>
    tpu.vector_store %arg5[%c0_22, %c0_23], %32 {strides = array<i32>} : memref<16x4xf32, #tpu.memory_space<vmem>>, vector<16x4xf32>,
    return
  }
}

</mosaic_0001>

<llo_original>
// kernel: tpu_custom_call.1
$region0: #{tpu_custom_call.1}
  #allocation0 [shape = 'u32[]', space=smem, size = 0x4, offset = 0x4, fixed_abs, tag = 'smem constant byte address 0x4 - core index']
  #allocation1 [shape = 'u32[144,128]{1,0:T(1,128)}', space=vmem, size = 0x12000, scoped, tag = 'internal scratch']
  %s0 = inlined_call_operand.vmem [shape: f32[16,32], index: 0, kind: input, shape index: {}]
  %s1 = inlined_call_operand.vmem [shape: bf16[32,256], index: 1, kind: input, shape index: {}]
  %s2 = inlined_call_operand.hbm [shape: bf16[2,256,256], index: 2, kind: input, shape index: {}]
  %s3 = inlined_call_operand.vmem [shape: bf16[256,4], index: 3, kind: input, shape index: {}]
  %s4 = inlined_call_operand.vmem [shape: f32[4,256], index: 4, kind: input, shape index: {}]
  %s5 = inlined_call_operand.vmem [shape: f32[16,4], index: 5, kind: output, shape index: {}]
  %s6 = sld [smem:[#allocation0]]
  $region34: #{tpu_custom_call.1} parent=0
    _
  %s8 = ssub.s32 1, %s6
  %s9 = scalar_select 0, %s8, %s6
  $region1: #{tpu_custom_call.1} parent=0
    #allocation2 [shape = 'u8[262144]{0}', space=vmem, size = 0x40000, scoped, tag = 'input window, operand 2, single buffered']
    #allocation3 [shape = 's32[1]{0}', space=sflag, size = 0x4, scoped, tag = 'scoped memory for tpu_custom_call.1']
    %10 = vsyncpa [#allocation3], 0
    // Predicated region
    $region2: #{tpu_custom_call.1} parent=1 // pred_check
      _
    $region3: #{tpu_custom_call.1} parent=1 // pred_check_branch
      %12 = sbr.rel (0) target = $region5
    $region4: #{tpu_custom_call.1} parent=1 // pred_region
      _
    $region5: #{tpu_custom_call.1} parent=1 // pred_fallthru
      _
    // Predicated region
    $region6: #{tpu_custom_call.1} parent=1 // pred_check
      _
    $region7: #{tpu_custom_call.1} parent=1 // pred_check_branch
      %14 = sbr.rel (0) target = $region9
    $region8: #{tpu_custom_call.1} parent=1 // pred_region
      _
    $region9: #{tpu_custom_call.1} parent=1 // pred_fallthru
      _
    // Predicated region
    $region10: #{tpu_custom_call.1} parent=1 // pred_check
      _
    $region11: #{tpu_custom_call.1} parent=1 // pred_check_branch
      %16 = sbr.rel (0) target = $region13
    $region12: #{tpu_custom_call.1} parent=1 // pred_region
      %s18 = ssub.s32 8192, 8192
      %19 = vsyncadd [#allocation3], %s18
      %s20 = sshll.u32 [#allocation2], 4
      %s21 = int_to_ptr.vmem [resolvable:$true] %s20
      %26 = dma.hbm_to_vmem [thread:$0]  %s2, 8192, %s21, [#allocation3], 128, 128, 8
    $region13: #{tpu_custom_call.1} parent=1 // pred_fallthru
      _
    // Predicated region
    $region14: #{tpu_custom_call.1} parent=1 // pred_check
      _
    $region15: #{tpu_custom_call.1} parent=1 // pred_check_branch
      %28 = sbr.rel (0) target = $region17
    $region16: #{tpu_custom_call.1} parent=1 // pred_region
      _
    $region17: #{tpu_custom_call.1} parent=1 // pred_fallthru
      _
    // Predicated region
    $region18: #{tpu_custom_call.1} parent=1 // pred_check
      _
    $region19: #{tpu_custom_call.1} parent=1 // pred_check_branch
      %30 = sbr.rel (0) target = $region21
    $region20: #{tpu_custom_call.1} parent=1 // pred_region
      _
    $region21: #{tpu_custom_call.1} parent=1 // pred_fallthru
      _
    // Predicated region
    $region22: #{tpu_custom_call.1} parent=1 // pred_check
      _
    $region23: #{tpu_custom_call.1} parent=1 // pred_check_branch
      %32 = sbr.rel (0) target = $region25
    $region24: #{tpu_custom_call.1} parent=1 // pred_region
      %33 = dma.done [#allocation3], 8192
    $region25: #{tpu_custom_call.1} parent=1 // pred_fallthru
      _
    %v35 = vld [vmem:[%s0] sm:$0xff]
    %v36 = vld [vmem:[%s0 + $0x8] sm:$0xff]
    %v37 = vpack.c.bf16 %v36, %v35
    %v38 = vld [vmem:[%s1] sm:$0xff]
    %v39 = vld [vmem:[%s1 + $0x8] sm:$0xff]
    %v40 = vld [vmem:[%s1 + $0x10] sm:$0xff]
    %v41 = vld [vmem:[%s1 + $0x18] sm:$0xff]
    %v42 = vld [vmem:[%s4] ss:$4 sm:$0x3]
    %v44 = vlaneseq
    %v45 = vshrl.u32 %v44, 7
    %v46 = vsub.s32 0, %v45
    %v47 = vrot.slane %v42, %v46
    %v48 = vlaneseq
    %v49 = vshrl.u32 %v48, 7
    %v50 = vsub.s32 1, %v49
    %v51 = vrot.slane %v42, %v50
    %v58 = vunpack.c.l.b16 %v38
    %v59 = vunpack.c.h.b16 %v38
    %v60 = vunpack.c.l.b16 %v39
    %v61 = vunpack.c.h.b16 %v39
    %v62 = vunpack.c.l.b16 %v40
    %v63 = vunpack.c.h.b16 %v40
    %v64 = vunpack.c.l.b16 %v41
    %v65 = vunpack.c.h.b16 %v41
    %v66 = vpack.c.b16 %v60, %v58
    %v67 = vpack.c.b16 %v61, %v59
    %v68 = vpack.c.b16 %v64, %v62
    %v69 = vpack.c.b16 %v65, %v63
    %vm74 = vcmask 261120
    %v76 = vsel %vm74, %v37, 0
    %78 = vmatprep.subr.bf16.mxu0 0
    %79 = vmatpush1.bf16.msra.mxu0 0
    %80 = vmatprep.subr.bf16.mxu0 0
    %81 = vmatpush1.bf16.msra.mxu0 0
    %82 = vmatprep.subr.bf16.mxu0 0
    %83 = vmatpush1.bf16.msra.mxu0 0
    %84 = vmatprep.subr.bf16.mxu0 0
    %85 = vmatpush1.bf16.msra.mxu0 0
    %86 = vmatprep.subr.bf16.mxu0 0
    %87 = vmatpush1.bf16.msra.mxu0 0
    %88 = vmatprep.subr.bf16.mxu0 0
    %89 = vmatpush1.bf16.msra.mxu0 0
    %90 = vmatprep.subr.bf16.mxu0 %v69
    %91 = vmatpush1.bf16.msra.mxu0 %v68
    %92 = vmatprep.subr.bf16.mxu0 %v67
    %93 = vmatpush1.bf16.msra.mxu0 %v66
    %94 = vmatprep.subr.bf16.mxu0 0
    %95 = vmatpush2.bf16.msra.mxu0 0
    %96 = vmatprep.subr.bf16.mxu0 0
    %97 = vmatpush2.bf16.msra.mxu0 0
    %98 = vmatprep.subr.bf16.mxu0 0
    %99 = vmatpush2.bf16.msra.mxu0 0
    %100 = vmatprep.subr.bf16.mxu0 0
    %101 = vmatpush2.bf16.msra.mxu0 0
    %102 = vmatprep.subr.bf16.mxu0 0
    %103 = vmatpush2.bf16.msra.mxu0 0
    %104 = vmatprep.subr.bf16.mxu0 0
    %105 = vmatpush2.bf16.msra.mxu0 0
    %106 = vmatprep.subr.bf16.mxu0 0
    %107 = vmatpush2.bf16.msra.mxu0 0
    %108 = vmatprep.subr.bf16.mxu0 0
    %109 = vmatpush2.bf16.msra.mxu0 0
    %110 = vmatprep.mubr.bf16.mxu0 0
    %111 = vmatmul.mubr.bf16.gmra.mxu0 %v76
    %v112 = vpop.f32.mrf.mxu0
    %v113 = vadd.f32 %v47, %v112
    %v114 = vpop.f32.mrf.mxu0
    %v115 = vadd.f32 %v51, %v114
    %v116 = vpop.f32.mrf.mxu0
    %v117 = vadd.f32 %v47, %v116
    %v118 = vpop.f32.mrf.mxu0
    %v119 = vadd.f32 %v51, %v118
    %120 = vdwg.mxu0
    %v121 = vmax.f32 %v113, 0.0
    %v122 = vmax.f32 %v115, 0.0
    %v123 = vmax.f32 %v117, 0.0
    %v124 = vmax.f32 %v119, 0.0
    %v125 = vpack.c.bf16 %v123, %v121
    %v126 = vpack.c.bf16 %v124, %v122
    %v127 = vld [vmem:[#allocation2] sm:$0xff]
    %v128 = vld [vmem:[#allocation2 + $0x8] sm:$0xff]
    %v129 = vld [vmem:[#allocation2 + $0x10] sm:$0xff]
    %v130 = vld [vmem:[#allocation2 + $0x18] sm:$0xff]
    %v131 = vld [vmem:[#allocation2 + $0x20] sm:$0xff]
    %v132 = vld [vmem:[#allocation2 + $0x28] sm:$0xff]
    %v133 = vld [vmem:[#allocation2 + $0x30] sm:$0xff]
    %v134 = vld [vmem:[#allocation2 + $0x38] sm:$0xff]
    %v135 = vld [vmem:[#allocation2 + $0x40] sm:$0xff]
    %v136 = vld [vmem:[#allocation2 + $0x48] sm:$0xff]
    %v137 = vld [vmem:[#allocation2 + $0x50] sm:$0xff]
    %v138 = vld [vmem:[#allocation2 + $0x58] sm:$0xff]
    %v139 = vld [vmem:[#allocation2 + $0x60] sm:$0xff]
    %v140 = vld [vmem:[#allocation2 + $0x68] sm:$0xff]
    %v141 = vld [vmem:[#allocation2 + $0x70] sm:$0xff]
    %v142 = vld [vmem:[#allocation2 + $0x78] sm:$0xff]
    %v143 = vld [vmem:[#allocation2 + $0x80] sm:$0xff]
    %v144 = vld [vmem:[#allocation2 + $0x88] sm:$0xff]
    %v145 = vld [vmem:[#allocation2 + $0x90] sm:$0xff]
    %v146 = vld [vmem:[#allocation2 + $0x98] sm:$0xff]
    %v147 = vld [vmem:[#allocation2 + $0xa0] sm:$0xff]
    %v148 = vld [vmem:[#allocation2 + $0xa8] sm:$0xff]
    %v149 = vld [vmem:[#allocation2 + $0xb0] sm:$0xff]
    %v150 = vld [vmem:[#allocation2 + $0xb8] sm:$0xff]
    %v151 = vld [vmem:[#allocation2 + $0xc0] sm:$0xff]
    %v152 = vld [vmem:[#allocation2 + $0xc8] sm:$0xff]
    %v153 = vld [vmem:[#allocation2 + $0xd0] sm:$0xff]
    %v154 = vld [vmem:[#allocation2 + $0xd8] sm:$0xff]
    %v155 = vld [vmem:[#allocation2 + $0xe0] sm:$0xff]
    %v156 = vld [vmem:[#allocation2 + $0xe8] sm:$0xff]
    %v157 = vld [vmem:[#allocation2 + $0xf0] sm:$0xff]
    %v158 = vld [vmem:[#allocation2 + $0xf8] sm:$0xff]
    %s159 = scalar_lea.vmem %s4, 1
    %v160 = vld [vmem:[%s159] ss:$4 sm:$0x3]
    %v162 = vlaneseq
    %v163 = vshrl.u32 %v162, 7
    %v164 = vsub.s32 0, %v163
    %v165 = vrot.slane %v160, %v164
    %v166 = vlaneseq
    %v167 = vshrl.u32 %v166, 7
    %v168 = vsub.s32 1, %v167
    %v169 = vrot.slane %v160, %v168
    %v204 = vunpack.c.l.b16 %v127
    %v205 = vunpack.c.h.b16 %v127
    %v206 = vunpack.c.l.b16 %v128
    %v207 = vunpack.c.h.b16 %v128
    %v208 = vunpack.c.l.b16 %v129
    %v209 = vunpack.c.h.b16 %v129
    %v210 = vunpack.c.l.b16 %v130
    %v211 = vunpack.c.h.b16 %v130
    %v212 = vunpack.c.l.b16 %v131
    %v213 = vunpack.c.h.b16 %v131
    %v214 = vunpack.c.l.b16 %v132
    %v215 = vunpack.c.h.b16 %v132
    %v216 = vunpack.c.l.b16 %v133
    %v217 = vunpack.c.h.b16 %v133
    %v218 = vunpack.c.l.b16 %v134
    %v219 = vunpack.c.h.b16 %v134
    %v220 = vunpack.c.l.b16 %v135
    %v221 = vunpack.c.h.b16 %v135
    %v222 = vunpack.c.l.b16 %v136
    %v223 = vunpack.c.h.b16 %v136
    %v224 = vunpack.c.l.b16 %v137
    %v225 = vunpack.c.h.b16 %v137
    %v226 = vunpack.c.l.b16 %v138
    %v227 = vunpack.c.h.b16 %v138
    %v228 = vunpack.c.l.b16 %v139
    %v229 = vunpack.c.h.b16 %v139
    %v230 = vunpack.c.l.b16 %v140
    %v231 = vunpack.c.h.b16 %v140
    %v232 = vunpack.c.l.b16 %v141
    %v233 = vunpack.c.h.b16 %v141
    %v234 = vunpack.c.l.b16 %v142
    %v235 = vunpack.c.h.b16 %v142
    %v236 = vunpack.c.l.b16 %v143
    %v237 = vunpack.c.h.b16 %v143
    %v238 = vunpack.c.l.b16 %v144
    %v239 = vunpack.c.h.b16 %v144
    %v240 = vunpack.c.l.b16 %v145
    %v241 = vunpack.c.h.b16 %v145
    %v242 = vunpack.c.l.b16 %v146
    %v243 = vunpack.c.h.b16 %v146
    %v244 = vunpack.c.l.b16 %v147
    %v245 = vunpack.c.h.b16 %v147
    %v246 = vunpack.c.l.b16 %v148
    %v247 = vunpack.c.h.b16 %v148
    %v248 = vunpack.c.l.b16 %v149
    %v249 = vunpack.c.h.b16 %v149
    %v250 = vunpack.c.l.b16 %v150
    %v251 = vunpack.c.h.b16 %v150
    %v252 = vunpack.c.l.b16 %v151
    %v253 = vunpack.c.h.b16 %v151
    %v254 = vunpack.c.l.b16 %v152
    %v255 = vunpack.c.h.b16 %v152
    %v256 = vunpack.c.l.b16 %v153
    %v257 = vunpack.c.h.b16 %v153
    %v258 = vunpack.c.l.b16 %v154
    %v259 = vunpack.c.h.b16 %v154
    %v260 = vunpack.c.l.b16 %v155
    %v261 = vunpack.c.h.b16 %v155
    %v262 = vunpack.c.l.b16 %v156
    %v263 = vunpack.c.h.b16 %v156
    %v264 = vunpack.c.l.b16 %v157
    %v265 = vunpack.c.h.b16 %v157
    %v266 = vunpack.c.l.b16 %v158
    %v267 = vunpack.c.h.b16 %v158
    %v268 = vpack.c.b16 %v206, %v204
    %v269 = vpack.c.b16 %v207, %v205
    %v270 = vpack.c.b16 %v210, %v208
    %v271 = vpack.c.b16 %v211, %v209
    %v272 = vpack.c.b16 %v214, %v212
    %v273 = vpack.c.b16 %v215, %v213
    %v274 = vpack.c.b16 %v218, %v216
    %v275 = vpack.c.b16 %v219, %v217
    %v276 = vpack.c.b16 %v222, %v220
    %v277 = vpack.c.b16 %v223, %v221
    %v278 = vpack.c.b16 %v226, %v224
    %v279 = vpack.c.b16 %v227, %v225
    %v280 = vpack.c.b16 %v230, %v228
    %v281 = vpack.c.b16 %v231, %v229
    %v282 = vpack.c.b16 %v234, %v232
    %v283 = vpack.c.b16 %v235, %v233
    %v284 = vpack.c.b16 %v238, %v236
    %v285 = vpack.c.b16 %v239, %v237
    %v286 = vpack.c.b16 %v242, %v240
    %v287 = vpack.c.b16 %v243, %v241
    %v288 = vpack.c.b16 %v246, %v244
    %v289 = vpack.c.b16 %v247, %v245
    %v290 = vpack.c.b16 %v250, %v248
    %v291 = vpack.c.b16 %v251, %v249
    %v292 = vpack.c.b16 %v254, %v252
    %v293 = vpack.c.b16 %v255, %v253
    %v294 = vpack.c.b16 %v258, %v256
    %v295 = vpack.c.b16 %v259, %v257
    %v296 = vpack.c.b16 %v262, %v260
    %v297 = vpack.c.b16 %v263, %v261
    %v298 = vpack.c.b16 %v266, %v264
    %v299 = vpack.c.b16 %v267, %v265
    %332 = vmatprep.subr.bf16.mxu0 %v283
    %333 = vmatpush1.bf16.msra.mxu0 %v282
    %334 = vmatprep.subr.bf16.mxu0 %v281
    %335 = vmatpush1.bf16.msra.mxu0 %v280
    %336 = vmatprep.subr.bf16.mxu0 %v279
    %337 = vmatpush1.bf16.msra.mxu0 %v278
    %338 = vmatprep.subr.bf16.mxu0 %v277
    %339 = vmatpush1.bf16.msra.mxu0 %v276
    %340 = vmatprep.subr.bf16.mxu0 %v275
    %341 = vmatpush1.bf16.msra.mxu0 %v274
    %342 = vmatprep.subr.bf16.mxu0 %v273
    %343 = vmatpush1.bf16.msra.mxu0 %v272
    %344 = vmatprep.subr.bf16.mxu0 %v271
    %345 = vmatpush1.bf16.msra.mxu0 %v270
    %346 = vmatprep.subr.bf16.mxu0 %v269
    %347 = vmatpush1.bf16.msra.mxu0 %v268
    %348 = vmatprep.subr.bf16.mxu0 %v299
    %349 = vmatpush2.bf16.msra.mxu0 %v298
    %350 = vmatprep.subr.bf16.mxu0 %v297
    %351 = vmatpush2.bf16.msra.mxu0 %v296
    %352 = vmatprep.subr.bf16.mxu0 %v295
    %353 = vmatpush2.bf16.msra.mxu0 %v294
    %354 = vmatprep.subr.bf16.mxu0 %v293
    %355 = vmatpush2.bf16.msra.mxu0 %v292
    %356 = vmatprep.subr.bf16.mxu0 %v291
    %357 = vmatpush2.bf16.msra.mxu0 %v290
    %358 = vmatprep.subr.bf16.mxu0 %v289
    %359 = vmatpush2.bf16.msra.mxu0 %v288
    %360 = vmatprep.subr.bf16.mxu0 %v287
    %361 = vmatpush2.bf16.msra.mxu0 %v286
    %362 = vmatprep.subr.bf16.mxu0 %v285
    %363 = vmatpush2.bf16.msra.mxu0 %v284
    %364 = vmatprep.mubr.bf16.mxu0 %v126
    %365 = vmatmul.mubr.bf16.gmra.mxu0 %v125
    %v366 = vpop.f32.mrf.mxu0
    %v367 = vadd.f32 %v165, %v366
    %v368 = vpop.f32.mrf.mxu0
    %v369 = vadd.f32 %v169, %v368
    %v370 = vpop.f32.mrf.mxu0
    %v371 = vadd.f32 %v165, %v370
    %v372 = vpop.f32.mrf.mxu0
    %v373 = vadd.f32 %v169, %v372
    %374 = vdwg.mxu0
    %v375 = vmax.f32 %v367, 0.0
    %v376 = vmax.f32 %v369, 0.0
    %v377 = vmax.f32 %v371, 0.0
    %v378 = vmax.f32 %v373, 0.0
    %v379 = vpack.c.bf16 %v377, %v375
    %v380 = vpack.c.bf16 %v378, %v376
    %s381 = scalar_lea.vmem [#allocation2], 256
    %v382 = vld [vmem:[%s381] sm:$0xff]
    %v383 = vld [vmem:[%s381 + $0x8] sm:$0xff]
    %v384 = vld [vmem:[%s381 + $0x10] sm:$0xff]
    %v385 = vld [vmem:[%s381 + $0x18] sm:$0xff]
    %v386 = vld [vmem:[%s381 + $0x20] sm:$0xff]
    %v387 = vld [vmem:[%s381 + $0x28] sm:$0xff]
    %v388 = vld [vmem:[%s381 + $0x30] sm:$0xff]
    %v389 = vld [vmem:[%s381 + $0x38] sm:$0xff]
    %v390 = vld [vmem:[%s381 + $0x40] sm:$0xff]
    %v391 = vld [vmem:[%s381 + $0x48] sm:$0xff]
    %v392 = vld [vmem:[%s381 + $0x50] sm:$0xff]
    %v393 = vld [vmem:[%s381 + $0x58] sm:$0xff]
    %v394 = vld [vmem:[%s381 + $0x60] sm:$0xff]
    %v395 = vld [vmem:[%s381 + $0x68] sm:$0xff]
    %v396 = vld [vmem:[%s381 + $0x70] sm:$0xff]
    %v397 = vld [vmem:[%s381 + $0x78] sm:$0xff]
    %v398 = vld [vmem:[%s381 + $0x80] sm:$0xff]
    %v399 = vld [vmem:[%s381 + $0x88] sm:$0xff]
    %v400 = vld [vmem:[%s381 + $0x90] sm:$0xff]
    %v401 = vld [vmem:[%s381 + $0x98] sm:$0xff]
    %v402 = vld [vmem:[%s381 + $0xa0] sm:$0xff]
    %v403 = vld [vmem:[%s381 + $0xa8] sm:$0xff]
    %v404 = vld [vmem:[%s381 + $0xb0] sm:$0xff]
    %v405 = vld [vmem:[%s381 + $0xb8] sm:$0xff]
    %v406 = vld [vmem:[%s381 + $0xc0] sm:$0xff]
    %v407 = vld [vmem:[%s381 + $0xc8] sm:$0xff]
    %v408 = vld [vmem:[%s381 + $0xd0] sm:$0xff]
    %v409 = vld [vmem:[%s381 + $0xd8] sm:$0xff]
    %v410 = vld [vmem:[%s381 + $0xe0] sm:$0xff]
    %v411 = vld [vmem:[%s381 + $0xe8] sm:$0xff]
    %v412 = vld [vmem:[%s381 + $0xf0] sm:$0xff]
    %v413 = vld [vmem:[%s381 + $0xf8] sm:$0xff]
    %s414 = scalar_lea.vmem %s4, 2
    %v415 = vld [vmem:[%s414] ss:$4 sm:$0x3]
    %v417 = vlaneseq
    %v418 = vshrl.u32 %v417, 7
    %v419 = vsub.s32 0, %v418
    %v420 = vrot.slane %v415, %v419
    %v421 = vlaneseq
    %v422 = vshrl.u32 %v421, 7
    %v423 = vsub.s32 1, %v422
    %v424 = vrot.slane %v415, %v423
    %v459 = vunpack.c.l.b16 %v382
    %v460 = vunpack.c.h.b16 %v382
    %v461 = vunpack.c.l.b16 %v383
    %v462 = vunpack.c.h.b16 %v383
    %v463 = vunpack.c.l.b16 %v384
    %v464 = vunpack.c.h.b16 %v384
    %v465 = vunpack.c.l.b16 %v385
    %v466 = vunpack.c.h.b16 %v385
    %v467 = vunpack.c.l.b16 %v386
    %v468 = vunpack.c.h.b16 %v386
    %v469 = vunpack.c.l.b16 %v387
    %v470 = vunpack.c.h.b16 %v387
    %v471 = vunpack.c.l.b16 %v388
    %v472 = vunpack.c.h.b16 %v388
    %v473 = vunpack.c.l.b16 %v389
    %v474 = vunpack.c.h.b16 %v389
    %v475 = vunpack.c.l.b16 %v390
    %v476 = vunpack.c.h.b16 %v390
    %v477 = vunpack.c.l.b16 %v391
    %v478 = vunpack.c.h.b16 %v391
    %v479 = vunpack.c.l.b16 %v392
    %v480 = vunpack.c.h.b16 %v392
    %v481 = vunpack.c.l.b16 %v393
    %v482 = vunpack.c.h.b16 %v393
    %v483 = vunpack.c.l.b16 %v394
    %v484 = vunpack.c.h.b16 %v394
    %v485 = vunpack.c.l.b16 %v395
    %v486 = vunpack.c.h.b16 %v395
    %v487 = vunpack.c.l.b16 %v396
    %v488 = vunpack.c.h.b16 %v396
    %v489 = vunpack.c.l.b16 %v397
    %v490 = vunpack.c.h.b16 %v397
    %v491 = vunpack.c.l.b16 %v398
    %v492 = vunpack.c.h.b16 %v398
    %v493 = vunpack.c.l.b16 %v399
    %v494 = vunpack.c.h.b16 %v399
    %v495 = vunpack.c.l.b16 %v400
    %v496 = vunpack.c.h.b16 %v400
    %v497 = vunpack.c.l.b16 %v401
    %v498 = vunpack.c.h.b16 %v401
    %v499 = vunpack.c.l.b16 %v402
    %v500 = vunpack.c.h.b16 %v402
    %v501 = vunpack.c.l.b16 %v403
    %v502 = vunpack.c.h.b16 %v403
    %v503 = vunpack.c.l.b16 %v404
    %v504 = vunpack.c.h.b16 %v404
    %v505 = vunpack.c.l.b16 %v405
    %v506 = vunpack.c.h.b16 %v405
    %v507 = vunpack.c.l.b16 %v406
    %v508 = vunpack.c.h.b16 %v406
    %v509 = vunpack.c.l.b16 %v407
    %v510 = vunpack.c.h.b16 %v407
    %v511 = vunpack.c.l.b16 %v408
    %v512 = vunpack.c.h.b16 %v408
    %v513 = vunpack.c.l.b16 %v409
    %v514 = vunpack.c.h.b16 %v409
    %v515 = vunpack.c.l.b16 %v410
    %v516 = vunpack.c.h.b16 %v410
    %v517 = vunpack.c.l.b16 %v411
    %v518 = vunpack.c.h.b16 %v411
    %v519 = vunpack.c.l.b16 %v412
    %v520 = vunpack.c.h.b16 %v412
    %v521 = vunpack.c.l.b16 %v413
    %v522 = vunpack.c.h.b16 %v413
    %v523 = vpack.c.b16 %v461, %v459
    %v524 = vpack.c.b16 %v462, %v460
    %v525 = vpack.c.b16 %v465, %v463
    %v526 = vpack.c.b16 %v466, %v464
    %v527 = vpack.c.b16 %v469, %v467
    %v528 = vpack.c.b16 %v470, %v468
    %v529 = vpack.c.b16 %v473, %v471
    %v530 = vpack.c.b16 %v474, %v472
    %v531 = vpack.c.b16 %v477, %v475
    %v532 = vpack.c.b16 %v478, %v476
    %v533 = vpack.c.b16 %v481, %v479
    %v534 = vpack.c.b16 %v482, %v480
    %v535 = vpack.c.b16 %v485, %v483
    %v536 = vpack.c.b16 %v486, %v484
    %v537 = vpack.c.b16 %v489, %v487
    %v538 = vpack.c.b16 %v490, %v488
    %v539 = vpack.c.b16 %v493, %v491
    %v540 = vpack.c.b16 %v494, %v492
    %v541 = vpack.c.b16 %v497, %v495
    %v542 = vpack.c.b16 %v498, %v496
    %v543 = vpack.c.b16 %v501, %v499
    %v544 = vpack.c.b16 %v502, %v500
    %v545 = vpack.c.b16 %v505, %v503
    %v546 = vpack.c.b16 %v506, %v504
    %v547 = vpack.c.b16 %v509, %v507
    %v548 = vpack.c.b16 %v510, %v508
    %v549 = vpack.c.b16 %v513, %v511
    %v550 = vpack.c.b16 %v514, %v512
    %v551 = vpack.c.b16 %v517, %v515
    %v552 = vpack.c.b16 %v518, %v516
    %v553 = vpack.c.b16 %v521, %v519
    %v554 = vpack.c.b16 %v522, %v520
    %587 = vmatprep.subr.bf16.mxu0 %v538
    %588 = vmatpush1.bf16.msra.mxu0 %v537
    %589 = vmatprep.subr.bf16.mxu0 %v536
    %590 = vmatpush1.bf16.msra.mxu0 %v535
    %591 = vmatprep.subr.bf16.mxu0 %v534
    %592 = vmatpush1.bf16.msra.mxu0 %v533
    %593 = vmatprep.subr.bf16.mxu0 %v532
    %594 = vmatpush1.bf16.msra.mxu0 %v531
    %595 = vmatprep.subr.bf16.mxu0 %v530
    %596 = vmatpush1.bf16.msra.mxu0 %v529
    %597 = vmatprep.subr.bf16.mxu0 %v528
    %598 = vmatpush1.bf16.msra.mxu0 %v527
    %599 = vmatprep.subr.bf16.mxu0 %v526
    %600 = vmatpush1.bf16.msra.mxu0 %v525
    %601 = vmatprep.subr.bf16.mxu0 %v524
    %602 = vmatpush1.bf16.msra.mxu0 %v523
    %603 = vmatprep.subr.bf16.mxu0 %v554
    %604 = vmatpush2.bf16.msra.mxu0 %v553
    %605 = vmatprep.subr.bf16.mxu0 %v552
    %606 = vmatpush2.bf16.msra.mxu0 %v551
    %607 = vmatprep.subr.bf16.mxu0 %v550
    %608 = vmatpush2.bf16.msra.mxu0 %v549
    %609 = vmatprep.subr.bf16.mxu0 %v548
    %610 = vmatpush2.bf16.msra.mxu0 %v547
    %611 = vmatprep.subr.bf16.mxu0 %v546
    %612 = vmatpush2.bf16.msra.mxu0 %v545
    %613 = vmatprep.subr.bf16.mxu0 %v544
    %614 = vmatpush2.bf16.msra.mxu0 %v543
    %615 = vmatprep.subr.bf16.mxu0 %v542
    %616 = vmatpush2.bf16.msra.mxu0 %v541
    %617 = vmatprep.subr.bf16.mxu0 %v540
    %618 = vmatpush2.bf16.msra.mxu0 %v539
    %619 = vmatprep.mubr.bf16.mxu0 %v380
    %620 = vmatmul.mubr.bf16.gmra.mxu0 %v379
    %v621 = vpop.f32.mrf.mxu0
    %v622 = vadd.f32 %v420, %v621
    %v623 = vpop.f32.mrf.mxu0
    %v624 = vadd.f32 %v424, %v623
    %v625 = vpop.f32.mrf.mxu0
    %v626 = vadd.f32 %v420, %v625
    %v627 = vpop.f32.mrf.mxu0
    %v628 = vadd.f32 %v424, %v627
    %629 = vdwg.mxu0
    %v630 = vmax.f32 %v622, 0.0
    %v631 = vmax.f32 %v624, 0.0
    %v632 = vmax.f32 %v626, 0.0
    %v633 = vmax.f32 %v628, 0.0
    %v634 = vpack.c.bf16 %v632, %v630
    %v635 = vpack.c.bf16 %v633, %v631
    %v636 = vld [vmem:[%s3] sm:$0xf]
    %v637 = vld [vmem:[%s3 + $0x4] sm:$0xf]
    %v638 = vld [vmem:[%s3 + $0x8] sm:$0xf]
    %v639 = vld [vmem:[%s3 + $0xc] sm:$0xf]
    %v640 = vld [vmem:[%s3 + $0x10] sm:$0xf]
    %v641 = vld [vmem:[%s3 + $0x14] sm:$0xf]
    %v642 = vld [vmem:[%s3 + $0x18] sm:$0xf]
    %v643 = vld [vmem:[%s3 + $0x1c] sm:$0xf]
    %v644 = vld [vmem:[%s3 + $0x20] sm:$0xf]
    %v645 = vld [vmem:[%s3 + $0x24] sm:$0xf]
    %v646 = vld [vmem:[%s3 + $0x28] sm:$0xf]
    %v647 = vld [vmem:[%s3 + $0x2c] sm:$0xf]
    %v648 = vld [vmem:[%s3 + $0x30] sm:$0xf]
    %v649 = vld [vmem:[%s3 + $0x34] sm:$0xf]
    %v650 = vld [vmem:[%s3 + $0x38] sm:$0xf]
    %v651 = vld [vmem:[%s3 + $0x3c] sm:$0xf]
    %v652 = vld [vmem:[%s3 + $0x40] sm:$0xf]
    %v653 = vld [vmem:[%s3 + $0x44] sm:$0xf]
    %v654 = vld [vmem:[%s3 + $0x48] sm:$0xf]
    %v655 = vld [vmem:[%s3 + $0x4c] sm:$0xf]
    %v656 = vld [vmem:[%s3 + $0x50] sm:$0xf]
    %v657 = vld [vmem:[%s3 + $0x54] sm:$0xf]
    %v658 = vld [vmem:[%s3 + $0x58] sm:$0xf]
    %v659 = vld [vmem:[%s3 + $0x5c] sm:$0xf]
    %v660 = vld [vmem:[%s3 + $0x60] sm:$0xf]
    %v661 = vld [vmem:[%s3 + $0x64] sm:$0xf]
    %v662 = vld [vmem:[%s3 + $0x68] sm:$0xf]
    %v663 = vld [vmem:[%s3 + $0x6c] sm:$0xf]
    %v664 = vld [vmem:[%s3 + $0x70] sm:$0xf]
    %v665 = vld [vmem:[%s3 + $0x74] sm:$0xf]
    %v666 = vld [vmem:[%s3 + $0x78] sm:$0xf]
    %v667 = vld [vmem:[%s3 + $0x7c] sm:$0xf]
    %v668 = vld [vmem:[%s4 + $0x3] sm:$0x1]
    %v669 = vlaneseq
    %v670 = vshrl.u32 %v669, 7
    %v671 = vsub.s32 0, %v670
    %v672 = vrot.slane %v668, %v671
    %v705 = vunpack.c.l.b16 %v636
    %v706 = vunpack.c.l.b16 %v637
    %v707 = vunpack.c.l.b16 %v638
    %v708 = vunpack.c.l.b16 %v639
    %v709 = vunpack.c.l.b16 %v640
    %v710 = vunpack.c.l.b16 %v641
    %v711 = vunpack.c.l.b16 %v642
    %v712 = vunpack.c.l.b16 %v643
    %v713 = vunpack.c.l.b16 %v644
    %v714 = vunpack.c.l.b16 %v645
    %v715 = vunpack.c.l.b16 %v646
    %v716 = vunpack.c.l.b16 %v647
    %v717 = vunpack.c.l.b16 %v648
    %v718 = vunpack.c.l.b16 %v649
    %v719 = vunpack.c.l.b16 %v650
    %v720 = vunpack.c.l.b16 %v651
    %v721 = vunpack.c.l.b16 %v652
    %v722 = vunpack.c.l.b16 %v653
    %v723 = vunpack.c.l.b16 %v654
    %v724 = vunpack.c.l.b16 %v655
    %v725 = vunpack.c.l.b16 %v656
    %v726 = vunpack.c.l.b16 %v657
    %v727 = vunpack.c.l.b16 %v658
    %v728 = vunpack.c.l.b16 %v659
    %v729 = vunpack.c.l.b16 %v660
    %v730 = vunpack.c.l.b16 %v661
    %v731 = vunpack.c.l.b16 %v662
    %v732 = vunpack.c.l.b16 %v663
    %v733 = vunpack.c.l.b16 %v664
    %v734 = vunpack.c.l.b16 %v665
    %v735 = vunpack.c.l.b16 %v666
    %v736 = vunpack.c.l.b16 %v667
    %v737 = vpack.c.b16 %v706, %v705
    %v738 = vpack.c.b16 %v708, %v707
    %v739 = vpack.c.b16 %v710, %v709
    %v740 = vpack.c.b16 %v712, %v711
    %v741 = vpack.c.b16 %v714, %v713
    %v742 = vpack.c.b16 %v716, %v715
    %v743 = vpack.c.b16 %v718, %v717
    %v744 = vpack.c.b16 %v720, %v719
    %v745 = vpack.c.b16 %v722, %v721
    %v746 = vpack.c.b16 %v724, %v723
    %v747 = vpack.c.b16 %v726, %v725
    %v748 = vpack.c.b16 %v728, %v727
    %v749 = vpack.c.b16 %v730, %v729
    %v750 = vpack.c.b16 %v732, %v731
    %v751 = vpack.c.b16 %v734, %v733
    %v752 = vpack.c.b16 %v736, %v735
    %769 = vmatprep.subr.bf16.mxu0 0
    %770 = vmatpush1.bf16.msra.mxu0 %v744
    %771 = vmatprep.subr.bf16.mxu0 0
    %772 = vmatpush1.bf16.msra.mxu0 %v743
    %773 = vmatprep.subr.bf16.mxu0 0
    %774 = vmatpush1.bf16.msra.mxu0 %v742
    %775 = vmatprep.subr.bf16.mxu0 0
    %776 = vmatpush1.bf16.msra.mxu0 %v741
    %777 = vmatprep.subr.bf16.mxu0 0
    %778 = vmatpush1.bf16.msra.mxu0 %v740
    %779 = vmatprep.subr.bf16.mxu0 0
    %780 = vmatpush1.bf16.msra.mxu0 %v739
    %781 = vmatprep.subr.bf16.mxu0 0
    %782 = vmatpush1.bf16.msra.mxu0 %v738
    %783 = vmatprep.subr.bf16.mxu0 0
    %784 = vmatpush1.bf16.msra.mxu0 %v737
    %785 = vmatprep.subr.bf16.mxu0 0
    %786 = vmatpush2.bf16.msra.mxu0 %v752
    %787 = vmatprep.subr.bf16.mxu0 0
    %788 = vmatpush2.bf16.msra.mxu0 %v751
    %789 = vmatprep.subr.bf16.mxu0 0
    %790 = vmatpush2.bf16.msra.mxu0 %v750
    %791 = vmatprep.subr.bf16.mxu0 0
    %792 = vmatpush2.bf16.msra.mxu0 %v749
    %793 = vmatprep.subr.bf16.mxu0 0
    %794 = vmatpush2.bf16.msra.mxu0 %v748
    %795 = vmatprep.subr.bf16.mxu0 0
    %796 = vmatpush2.bf16.msra.mxu0 %v747
    %797 = vmatprep.subr.bf16.mxu0 0
    %798 = vmatpush2.bf16.msra.mxu0 %v746
    %799 = vmatprep.subr.bf16.mxu0 0
    %800 = vmatpush2.bf16.msra.mxu0 %v745
    %801 = vmatprep.mubr.bf16.mxu0 %v635
    %802 = vmatmul.mubr.bf16.gmra.mxu0 %v634
    %v803 = vpop.f32.mrf.mxu0
    %v804 = vadd.f32 %v672, %v803
    %v805 = vpop.f32.mrf.mxu0
    %v806 = vpop.f32.mrf.mxu0
    %v807 = vadd.f32 %v672, %v806
    %v808 = vpop.f32.mrf.mxu0
    %809 = vdwg.mxu0
    %vm810 = vcmask 31744
    %811 = vst.msk [vmem:[%s5] sm:$0xff] %vm810, %v804
    %812 = vst.msk [vmem:[%s5 + $0x8] sm:$0xff] %vm810, %v807
    // Predicated region
    $region26: #{tpu_custom_call.1} parent=1 // pred_check
      _
    $region27: #{tpu_custom_call.1} parent=1 // pred_check_branch
      %814 = sbr.rel (0) target = $region29
    $region28: #{tpu_custom_call.1} parent=1 // pred_region
      _
    $region29: #{tpu_custom_call.1} parent=1 // pred_fallthru
      _
    // Predicated region
    $region30: #{tpu_custom_call.1} parent=1 // pred_check
      _
    $region31: #{tpu_custom_call.1} parent=1 // pred_check_branch
      %816 = sbr.rel (0) target = $region33
    $region32: #{tpu_custom_call.1} parent=1 // pred_region
      _
    $region33: #{tpu_custom_call.1} parent=1 // pred_fallthru
      _
    %817 = vsyncpa [#allocation3], 1

</llo_original>
